<compile_context>
chip_gen: v7x
topology: tpu7x:2x2x1
jax: 0.10.0
libtpu: 0.0.40
codegen_flags: <defaults>
</compile_context>

<pallas_src>
import functools

import jax
import jax.numpy as jnp
import numpy as np
from jax import lax
from jax.experimental import pallas as pl
from jax.experimental.pallas import tpu as pltpu

LN_EPS = 1e-12  # config.layer_norm_eps default


def _ln_tail_dtype():
    """bf16 LN tail on parts with a native-bf16 VPU (v6e/v7x); f32 elsewhere."""
    kind = jax.devices()[0].device_kind.lower()
    return jnp.bfloat16 if ("v6" in kind or "v7" in kind) else jnp.float32


def _layernorm_store(emb, gamma_ref, beta_ref, o_ref):
    # Two-pass (centered) statistics in f32; `centered` is reused for the normalize,
    # so this costs no extra elementwise pass vs E[x^2]-E[x]^2 and avoids cancellation.
    mean = jnp.mean(emb, axis=-1, keepdims=True)
    centered = emb - mean
    var = jnp.mean(centered * centered, axis=-1, keepdims=True)
    inv = lax.rsqrt(var + LN_EPS)
    # Elementwise tail in the dtype of gamma/beta, chosen by the wrapper
    # (f32 on v5-, bf16 on v6e/v7x).
    t = gamma_ref.dtype
    out = centered.astype(t) * inv.astype(t) * gamma_ref[...] + beta_ref[...]
    o_ref[...] = out.astype(o_ref.dtype)
    # TODO(synk): training-mode dropout (pltpu.prng_seed + pltpu.stateful_bernoulli);
    # identity at inference.


def _kernel_pos_arange(atom_ids_ref, x_ref, pos_ref, atab_ref, gamma_ref, beta_ref,
                       o_ref):
    # Block shapes (batch dim squeezed):
    #   atom_ids (TS, 1), x (TS, H), pos slice (TS, H), atom table (p_atom, H),
    #   gamma/beta (1, H), out (TS, H)
    x = x_ref[...].astype(jnp.float32)                       # (TS, H)
    ts = x.shape[0]
    p_atom = atab_ref.shape[0]

    # One-hot only over the atom vocabulary; position embeddings arrive as a direct
    # f32 table slice selected by the seq-tile BlockSpec (no iota/compare, exact add).
    col = lax.broadcasted_iota(jnp.int32, (ts, p_atom), 1)
    one_hot = (col == atom_ids_ref[...]).astype(jnp.bfloat16)  # (TS, p_atom)

    emb = (x + pos_ref[...].astype(jnp.float32)
           + jnp.dot(one_hot, atab_ref[...], preferred_element_type=jnp.float32))
    _layernorm_store(emb, gamma_ref, beta_ref, o_ref)


def _kernel_pos_general(p_pos, pos_ids_ref, atom_ids_ref, x_ref, tab_ref,
                        gamma_ref, beta_ref, o_ref):
    # Fused one-hot for both lookups: columns [0, p_pos) hit the position table,
    # columns [p_pos, p_total) hit the atom table (disjoint), so one MXU matmul
    # yields pos_emb + atom_emb.
    x = x_ref[...].astype(jnp.float32)                       # (TS, H)
    ts = x.shape[0]
    p_total = tab_ref.shape[0]

    col = lax.broadcasted_iota(jnp.int32, (ts, p_total), 1)
    pos_hit = col == pos_ids_ref[...]                         # (TS, P_total) vs (TS, 1)
    atom_hit = col == (atom_ids_ref[...] + p_pos)
    one_hot = jnp.logical_or(pos_hit, atom_hit).astype(jnp.bfloat16)

    emb = x + jnp.dot(one_hot, tab_ref[...], preferred_element_type=jnp.float32)
    _layernorm_store(emb, gamma_ref, beta_ref, o_ref)


def _pick_seq_tile(S, B):
    # Cap at 512: 512xH f32 in+out double-buffered stays well inside v5e's 16 MiB
    # scoped-VMEM default while already reaching ~85% of HBM roofline.
    ts = next((t for t in (512, 256, 128, 64, 32, 16, 8) if S % t == 0), S)
    # v7x has 2 TensorCores: keep >= 2 grid steps to shard across them when possible.
    while B * (S // ts) < 2 and ts > 8 and ts % 2 == 0 and S % (ts // 2) == 0:
        ts //= 2
    return ts


def _concrete_equals_arange(position_ids, B, S):
    try:
        pos = np.asarray(position_ids)
    except Exception:  # tracer under jit: cannot inspect -> general path
        return False
    if pos.shape != (B, S):
        return False
    return bool((pos == np.arange(S, dtype=pos.dtype)[None, :]).all())


def bert_embeddings(input_embeds, position_ids, atom_ids,
                    pos_table, atom_table, gamma, beta, *, out_dtype=None):
    B, S, H = input_embeds.shape
    p_pos = pos_table.shape[0]
    p_atom = atom_table.shape[0]
    # Module semantics: output dtype == input dtype.  Pass out_dtype=jnp.bfloat16 to
    # halve write-side HBM traffic if downstream accepts it (kernel is HBM-bound).
    out_dtype = input_embeds.dtype if out_dtype is None else jnp.dtype(out_dtype)

    ts = _pick_seq_tile(S, B)
    grid = (B, S // ts)

    tail_dtype = _ln_tail_dtype()
    gamma2 = gamma.reshape(1, H).astype(tail_dtype)
    beta2 = beta.reshape(1, H).astype(tail_dtype)
    atom_ids3 = atom_ids.astype(jnp.int32).reshape(B, S, 1)

    compiler_params = pltpu.CompilerParams(
        dimension_semantics=("parallel", "parallel"))
    resident = dict(pipeline_mode=pl.Buffered(1))  # constant index_map -> single-buffer

    fast = (_concrete_equals_arange(position_ids, B, S)
            and S <= p_pos
            and (ts % 8 == 0 or ts == p_pos))

    if fast:
        cost = pl.CostEstimate(
            flops=2 * B * S * p_atom * H + 10 * B * S * H,
            transcendentals=B * S,
            bytes_accessed=(2 * B * S * H * 4 + B * S * H * out_dtype.itemsize
                            + 4 * B * S + 2 * p_atom * H))
        grid_spec = pltpu.PrefetchScalarGridSpec(
            num_scalar_prefetch=0,
            grid=grid,
            in_specs=[
                pl.BlockSpec((pl.Squeezed(), ts, 1), lambda b, s: (b, s, 0)),   # atom_ids
                pl.BlockSpec((pl.Squeezed(), ts, H), lambda b, s: (b, s, 0)),   # input_embeds
                pl.BlockSpec((ts, H), lambda b, s: (s, 0)),                     # pos_table slice
                pl.BlockSpec((p_atom, H), lambda b, s: (0, 0), **resident),     # atom table (bf16)
                pl.BlockSpec((1, H), lambda b, s: (0, 0), **resident),          # LN weight
                pl.BlockSpec((1, H), lambda b, s: (0, 0), **resident),          # LN bias
            ],
            out_specs=pl.BlockSpec((pl.Squeezed(), ts, H), lambda b, s: (b, s, 0)))
        return pl.pallas_call(
            _kernel_pos_arange,
            out_shape=jax.ShapeDtypeStruct((B, S, H), out_dtype),
            grid_spec=grid_spec,
            compiler_params=compiler_params,
            cost_estimate=cost,
        )(atom_ids3, input_embeds, pos_table.astype(jnp.float32),
          atom_table.astype(jnp.bfloat16), gamma2, beta2)

    # General path: arbitrary position_ids -> fused bf16 one-hot matmul.
    # TODO(synk): for large vocabularies (p_total*H*2 bytes beyond a few MiB) the
    # resident table + (TS, p_total) one-hot stops fitting v7x's 64 MiB VMEM; switch
    # to a scalar-prefetch / pl.Element row gather there.
    pos_ids3 = position_ids.astype(jnp.int32).reshape(B, S, 1)
    table = jnp.concatenate([pos_table.astype(jnp.bfloat16),
                             atom_table.astype(jnp.bfloat16)], axis=0)
    p_total = p_pos + p_atom
    cost = pl.CostEstimate(
        flops=2 * B * S * p_total * H + 10 * B * S * H,
        transcendentals=B * S,
        bytes_accessed=(B * S * H * 4 + B * S * H * out_dtype.itemsize
                        + 8 * B * S + 2 * p_total * H))
    grid_spec = pltpu.PrefetchScalarGridSpec(
        num_scalar_prefetch=0,
        grid=grid,
        in_specs=[
            pl.BlockSpec((pl.Squeezed(), ts, 1), lambda b, s: (b, s, 0)),   # position_ids
            pl.BlockSpec((pl.Squeezed(), ts, 1), lambda b, s: (b, s, 0)),   # atom_ids
            pl.BlockSpec((pl.Squeezed(), ts, H), lambda b, s: (b, s, 0)),   # input_embeds
            pl.BlockSpec((p_total, H), lambda b, s: (0, 0), **resident),    # fused table
            pl.BlockSpec((1, H), lambda b, s: (0, 0), **resident),          # LN weight
            pl.BlockSpec((1, H), lambda b, s: (0, 0), **resident),          # LN bias
        ],
        out_specs=pl.BlockSpec((pl.Squeezed(), ts, H), lambda b, s: (b, s, 0)))
    return pl.pallas_call(
        functools.partial(_kernel_pos_general, p_pos),
        out_shape=jax.ShapeDtypeStruct((B, S, H), out_dtype),
        grid_spec=grid_spec,
        compiler_params=compiler_params,
        cost_estimate=cost,
    )(pos_ids3, atom_ids3, input_embeds, table, gamma2, beta2)


def _reference(input_embeds, position_ids, atom_ids, pos_table, atom_table, gamma, beta):
    emb = input_embeds + pos_table[position_ids] + atom_table[atom_ids]
    mean = jnp.mean(emb, axis=-1, keepdims=True)
    var = jnp.mean((emb - mean) ** 2, axis=-1, keepdims=True)
    return (emb - mean) / jnp.sqrt(var + LN_EPS) * gamma + beta


if __name__ == "__main__":
    # Small test shapes. NOTE: production perf requires H a multiple of 128
    # (e.g. real BERT H=768); H=32 here only checks correctness.
    B, S, H, MAX_POS = 2, 8, 32, 16

    key = jax.random.PRNGKey(0)
    k_x, k_pos, k_atom, k_aid, k_pid = jax.random.split(key, 5)

    input_embeds = jax.random.normal(k_x, (B, S, H), dtype=jnp.float32)
    # nn.Embedding default init: N(0, 1)
    pos_table = jax.random.normal(k_pos, (MAX_POS, H), dtype=jnp.float32)
    atom_table = jax.random.normal(k_atom, (MAX_POS, H), dtype=jnp.float32)
    # nn.LayerNorm default init: weight=1, bias=0
    gamma = jnp.ones((H,), dtype=jnp.float32)
    beta = jnp.zeros((H,), dtype=jnp.float32)

    atom_ids = jax.random.randint(k_aid, (B, S), 0, MAX_POS, dtype=jnp.int32)

    # Path 1: canonical position_ids = arange(S) -> sliced-pos-table fast path.
    position_ids = jnp.broadcast_to(jnp.arange(S, dtype=jnp.int32)[None, :], (B, S))
    out = jax.block_until_ready(
        bert_embeddings(input_embeds, position_ids, atom_ids,
                        pos_table, atom_table, gamma, beta))
    ref = _reference(input_embeds, position_ids, atom_ids,
                     pos_table, atom_table, gamma, beta)
    # Tolerance loosened vs the pure-f32 reference: atom table is bf16 on the MXU and
    # the LN tail may run in bf16 on v6e/v7x; the one-hot selection itself is exact.
    np.testing.assert_allclose(np.asarray(out), np.asarray(ref), atol=2e-2, rtol=2e-2)

    # Path 2: arbitrary position_ids -> fused one-hot general path.
    position_ids2 = jax.random.randint(k_pid, (B, S), 0, MAX_POS, dtype=jnp.int32)
    out2 = jax.block_until_ready(
        bert_embeddings(input_embeds, position_ids2, atom_ids,
                        pos_table, atom_table, gamma, beta))
    ref2 = _reference(input_embeds, position_ids2, atom_ids,
                      pos_table, atom_table, gamma, beta)
    np.testing.assert_allclose(np.asarray(out2), np.asarray(ref2), atol=2e-2, rtol=2e-2)

    print("KERNEL_OK")
</pallas_src>

<mosaic_0001>
module attributes {stable_mosaic.version = 11 : i64} {
  func.func @_kernel_pos_arange(%arg0: i32, %arg1: i32, %arg2: memref<1x8x1xi32, #tpu.memory_space<vmem>>, %arg3: memref<1x8x32xf32, #tpu.memory_space<vmem>>, %arg4: memref<8x32xf32, #tpu.memory_space<vmem>>, %arg5: memref<16x32xbf16, #tpu.memory_space<vmem>>, %arg6: memref<1x32xf32, #tpu.memory_space<vmem>>, %arg7: memref<1x32xf32, #tpu.memory_space<vmem>>, %arg8: memref<1x8x32xf32, #tpu.memory_space<vmem>>) attributes {dimension_semantics = [#tpu.dimension_semantics<parallel>, #tpu.dimension_semantics<parallel>], iteration_bounds = array<i64: 2, 1>, scalar_prefetch = 0 : i64, scratch_operands = 0 : i64, tpu.core_type = #tpu.core_type<tc>, window_params = [{transform_indices = @transform_0, window_bounds = array<i64: 1, 8, 1>}, {transform_indices = @transform_1, window_bounds = array<i64: 1, 8, 32>}, {transform_indices = @transform_2, window_bounds = array<i64: 8, 32>}, {pipeline_mode = #tpu.pipeline_mode<synchronous>, transform_indices = @transform_3, window_bounds = array<i64: 16, 32>}, {pipeline_mode = #tpu.pipeline_mode<synchronous>, transform_indices = @transform_4, window_bounds = array<i64: 1, 32>}, {pipeline_mode = #tpu.pipeline_mode<synchronous>, transform_indices = @transform_5, window_bounds = array<i64: 1, 32>}, {transform_indices = @transform_6, window_bounds = array<i64: 1, 8, 32>}]} {
    %c0 = arith.constant 0 : index
    %c0_0 = arith.constant 0 : index
    %c0_1 = arith.constant 0 : index
    %0 = vector.load %arg3[%c0, %c0_0, %c0_1] : memref<1x8x32xf32, #tpu.memory_space<vmem>>, vector<1x8x32xf32>
    %1 = vector.shape_cast %0 : vector<1x8x32xf32> to vector<8x32xf32>
    %2 = tpu.iota {dimensions = array<i32: 1>} : vector<8x16xi32>
    %c0_2 = arith.constant 0 : index
    %c0_3 = arith.constant 0 : index
    %c0_4 = arith.constant 0 : index
    %3 = vector.load %arg2[%c0_2, %c0_3, %c0_4] : memref<1x8x1xi32, #tpu.memory_space<vmem>>, vector<1x8x1xi32>
    %4 = vector.shape_cast %3 : vector<1x8x1xi32> to vector<8x1xi32>
    %5 = vector.broadcast %4 : vector<8x1xi32> to vector<8x16xi32>
    %6 = arith.cmpi eq, %2, %5 : vector<8x16xi32>
    %7 = arith.extui %6 : vector<8x16xi1> to vector<8x16xi32>
    %8 = arith.sitofp %7 : vector<8x16xi32> to vector<8x16xf32>
    %9 = arith.truncf %8 : vector<8x16xf32> to vector<8x16xbf16>
    %c0_5 = arith.constant 0 : index
    %c0_6 = arith.constant 0 : index
    %10 = vector.load %arg4[%c0_5, %c0_6] : memref<8x32xf32, #tpu.memory_space<vmem>>, vector<8x32xf32>
    %11 = arith.addf %1, %10 : vector<8x32xf32>
    %c0_7 = arith.constant 0 : index
    %c0_8 = arith.constant 0 : index
    %12 = vector.load %arg5[%c0_7, %c0_8] : memref<16x32xbf16, #tpu.memory_space<vmem>>, vector<16x32xbf16>
    %cst = arith.constant dense<0.000000e+00> : vector<8x32xf32>
    %13 = tpu.matmul %9, %12, %cst {dimension_numbers = #tpu.dot_dimension_numbers<[1], [0], [0], [1], [0, 0, 1, 1], [], []>} : vector<8x16xbf16>, vector<16x32xbf16>, vector<8x32xf32> -> vector<8x32xf32>
    %14 = arith.addf %11, %13 : vector<8x32xf32>
    %cst_9 = arith.constant dense<0.000000e+00> : vector<8xf32>
    %15 = vector.multi_reduction <add>, %14, %cst_9 [1] : vector<8x32xf32> to vector<8xf32>
    %16 = vector.shape_cast %15 : vector<8xf32> to vector<8x1xf32>
    %cst_10 = arith.constant 3.200000e+01 : f32
    %17 = vector.broadcast %cst_10 : f32 to vector<8x1xf32>
    %18 = arith.divf %16, %17 : vector<8x1xf32>
    %19 = vector.broadcast %18 : vector<8x1xf32> to vector<8x32xf32>
    %20 = arith.subf %14, %19 : vector<8x32xf32>
    %21 = arith.mulf %20, %20 : vector<8x32xf32>
    %cst_11 = arith.constant dense<0.000000e+00> : vector<8xf32>
    %22 = vector.multi_reduction <add>, %21, %cst_11 [1] : vector<8x32xf32> to vector<8xf32>
    %23 = vector.shape_cast %22 : vector<8xf32> to vector<8x1xf32>
    %cst_12 = arith.constant 3.200000e+01 : f32
    %24 = vector.broadcast %cst_12 : f32 to vector<8x1xf32>
    %25 = arith.divf %23, %24 : vector<8x1xf32>
    %cst_13 = arith.constant 9.99999996E-13 : f32
    %26 = vector.broadcast %cst_13 : f32 to vector<8x1xf32>
    %27 = arith.addf %25, %26 : vector<8x1xf32>
    %28 = math.rsqrt %27 : vector<8x1xf32>
    %29 = vector.broadcast %28 : vector<8x1xf32> to vector<8x32xf32>
    %30 = arith.mulf %20, %29 : vector<8x32xf32>
    %c0_14 = arith.constant 0 : index
    %c0_15 = arith.constant 0 : index
    %31 = vector.load %arg6[%c0_14, %c0_15] : memref<1x32xf32, #tpu.memory_space<vmem>>, vector<1x32xf32>
    %32 = vector.broadcast %31 : vector<1x32xf32> to vector<8x32xf32>
    %33 = arith.mulf %30, %32 : vector<8x32xf32>
    %c0_16 = arith.constant 0 : index
    %c0_17 = arith.constant 0 : index
    %34 = vector.load %arg7[%c0_16, %c0_17] : memref<1x32xf32, #tpu.memory_space<vmem>>, vector<1x32xf32>
    %35 = vector.broadcast %34 : vector<1x32xf32> to vector<8x32xf32>
    %36 = arith.addf %33, %35 : vector<8x32xf32>
    %c0_18 = arith.constant 0 : index
    %c0_19 = arith.constant 0 : index
    %c0_20 = arith.constant 0 : index
    %37 = vector.load %arg8[%c0_18, %c0_19, %c0_20] : memref<1x8x32xf32, #tpu.memory_space<vmem>>, vector<1x8x32xf32>
    %38 = vector.shape_cast %37 : vector<1x8x32xf32> to vector<8x32xf32>
    %39 = vector.shape_cast %36 : vector<8x32xf32> to vector<1x8x32xf32>
    tpu.vector_store %arg8[%c0_18, %c0_19, %c0_20], %39 {strides = array<i32>} : memref<1x8x32xf32, #tpu.memory_space<vmem>>, vector<1x8x32xf32>,
    return
  }
  func.func @transform_0(%arg0: i32, %arg1: i32) -> (i32, i32, i32) {
    %c0_i32 = arith.constant 0 : i32
    %c0_i32_0 = arith.constant 0 : i32
    return %arg0, %arg1, %c0_i32 : i32, i32, i32
  }
  func.func @transform_1(%arg0: i32, %arg1: i32) -> (i32, i32, i32) {
    %c0_i32 = arith.constant 0 : i32
    %c0_i32_0 = arith.constant 0 : i32
    return %arg0, %arg1, %c0_i32 : i32, i32, i32
  }
  func.func @transform_2(%arg0: i32, %arg1: i32) -> (i32, i32) {
    %c0_i32 = arith.constant 0 : i32
    %c0_i32_0 = arith.constant 0 : i32
    return %arg1, %c0_i32 : i32, i32
  }
  func.func @transform_3(%arg0: i32, %arg1: i32) -> (i32, i32) {
    %c0_i32 = arith.constant 0 : i32
    %c0_i32_0 = arith.constant 0 : i32
    %c0_i32_1 = arith.constant 0 : i32
    return %c0_i32, %c0_i32_0 : i32, i32
  }
  func.func @transform_4(%arg0: i32, %arg1: i32) -> (i32, i32) {
    %c0_i32 = arith.constant 0 : i32
    %c0_i32_0 = arith.constant 0 : i32
    %c0_i32_1 = arith.constant 0 : i32
    return %c0_i32, %c0_i32_0 : i32, i32
  }
  func.func @transform_5(%arg0: i32, %arg1: i32) -> (i32, i32) {
    %c0_i32 = arith.constant 0 : i32
    %c0_i32_0 = arith.constant 0 : i32
    %c0_i32_1 = arith.constant 0 : i32
    return %c0_i32, %c0_i32_0 : i32, i32
  }
  func.func @transform_6(%arg0: i32, %arg1: i32) -> (i32, i32, i32) {
    %c0_i32 = arith.constant 0 : i32
    %c0_i32_0 = arith.constant 0 : i32
    return %arg0, %arg1, %c0_i32 : i32, i32, i32
  }
}

</mosaic_0001>

<llo_original>
// kernel: tpu_custom_call.1
$region0: #{tpu_custom_call.1}
  #allocation0 [shape = 'u32[]', space=smem, size = 0x4, offset = 0x4, fixed_abs, tag = 'smem constant byte address 0x4 - core index']
  #allocation1 [shape = 'u32[144,128]{1,0:T(1,128)}', space=vmem, size = 0x12000, scoped, tag = 'internal scratch']
  %s0 = inlined_call_operand.vmem [shape: s32[2,8,1], index: 0, kind: input, shape index: {}]
  %s1 = inlined_call_operand.vmem [shape: f32[2,8,32], index: 1, kind: input, shape index: {}]
  %s2 = inlined_call_operand.hbm [shape: f32[16,32], index: 2, kind: input, shape index: {}]
  %s3 = inlined_call_operand.vmem [shape: bf16[16,32], index: 3, kind: input, shape index: {}]
  %s4 = inlined_call_operand.vmem [shape: f32[1,32], index: 4, kind: input, shape index: {}]
  %s5 = inlined_call_operand.vmem [shape: f32[1,32], index: 5, kind: input, shape index: {}]
  %s6 = inlined_call_operand.hbm [shape: f32[2,8,32], index: 6, kind: output, shape index: {}]
  %s7 = sld [smem:[#allocation0]]
  $region61: #{tpu_custom_call.1} parent=0
    _
  %s9 = ssub.s32 1, %s7
  %s10 = scalar_select 0, %s9, %s7
  $region1: #{tpu_custom_call.1} parent=0
    #allocation2 [shape = 'u8[4096]{0}', space=vmem, size = 0x1000, scoped, tag = 'input window, operand 2, single buffered']
    #allocation3 [shape = 's32[2]{0}', space=sflag, size = 0x8, scoped, tag = 'scoped memory for tpu_custom_call.1']
    #allocation4 [shape = 's32[2]{0}', space=sflag, size = 0x8, scoped, tag = 'scoped memory for tpu_custom_call.1']
    #allocation5 [shape = 'u8[8192]{0}', space=vmem, size = 0x2000, scoped, tag = 'output window, operand 0']
    %11 = vsyncpa [#allocation3], 0
    %12 = vsyncpa [#allocation4], 0
    %s13 = scalar_lea.sflag [#allocation4], 1
    %14 = vsyncpa %s13, 0
    loop: start=0, step=1, limit=4
    $region2: #{tpu_custom_call.1} parent=1 // loop_pre_header
      _
    $region3: #{tpu_custom_call.1} parent=1 // loop_header
      %s16 = sphi 0, %s20
      %p17 = scmp.ge.s32.totalorder %s16, 4
      %s23 = sphi 0, %s35
      %s24 = sphi 0, %s31
      %s25 = sphi 0, %s23
      %s26 = sphi 0, %s24
      %s27 = sphi 0, %s25
      %s28 = sphi 0, %s26
      %s40 = sphi 0, %s42
      %s43 = sphi 0, %s40
      %s44 = sphi 0, %s43
      %s60 = sphi 0, %s44
      %s68 = sphi 0, %s70
      %s71 = sphi 0, %s68
      %s72 = sphi 0, %s71
      %s88 = sphi 0, %s72
      %s94 = sphi 0, %s96
      %s97 = sphi 0, %s94
      %s98 = sphi 0, %s97
      %s114 = sphi 0, %s98
      %s118 = sphi 0, %s118
      %s120 = sphi 0, %s118
      %s121 = sphi 0, %s120
      %s135 = sphi 0, %s121
      %s139 = sphi 0, %s139
      %s141 = sphi 0, %s139
      %s142 = sphi 0, %s141
      %s156 = sphi 0, %s142
      %s160 = sphi 0, %s160
      %s162 = sphi 0, %s160
      %s163 = sphi 0, %s162
      %s177 = sphi 0, %s163
      %s185 = sphi 0, %s187
      %s188 = sphi 0, %s185
      %s189 = sphi 0, %s188
      %s205 = sphi 0, %s189
    $region4: #{tpu_custom_call.1} parent=1 // loop_header_branch
      %19 = sbr.rel (%p17) target = $region8
    $region5: #{tpu_custom_call.1} parent=1 // loop_body
      %s21 = ssub.s32 %s16, 1
      %s22 = ssub.s32 %s16, 2
      %s29 = sadd.s32 1, %s24
      %p30 = scmp.ge.s32.totalorder %s29, 1
      %s31 = scalar_select %p30, 0, %s29
      %s32 = sadd.s32 1, %s23
      %s33 = scalar_select %p30, %s32, %s23
      %p34 = scmp.ge.s32.totalorder %s33, 2
      %s35 = scalar_select %p34, 0, %s33
      %s36 = ssub.s32 %s23, %s35
      %s37 = ssub.s32 %s24, %s31
      %s38 = sor.u32 %s36, %s37
      %p39 = scmp.eq.s32.totalorder %s38, 0
      %s41 = sadd.s32 %s40, 1
      %s42 = scalar_select %p39, %s40, %s41
      %p45 = pneg %p39
      %p46 = scmp.eq.s32.totalorder %s16, 1
      %p47 = por %p45, %p46
      %p48 = scmp.ne.s32.totalorder %s40, %s43
      %p49 = scmp.eq.s32.totalorder %s16, 0
      %p50 = por %p48, %p49
      %p51 = scmp.ne.s32.totalorder %s40, %s43
      %p52 = scmp.eq.s32.totalorder %s21, 1
      %p53 = por %p51, %p52
      %p54 = scmp.ne.s32.totalorder %s43, %s44
      %p55 = scmp.eq.s32.totalorder %s21, 0
      %p56 = por %p54, %p55
      %p57 = scmp.ne.s32.totalorder %s43, %s44
      %p58 = scmp.eq.s32.totalorder %s22, 1
      %p59 = por %p57, %p58
      %p61 = scmp.ne.s32.totalorder %s44, %s60
      %p62 = scmp.eq.s32.totalorder %s22, 0
      %p63 = por %p61, %p62
      %s64 = ssub.s32 %s23, %s35
      %s65 = ssub.s32 %s24, %s31
      %s66 = sor.u32 %s64, %s65
      %p67 = scmp.eq.s32.totalorder %s66, 0
      %s69 = sadd.s32 %s68, 1
      %s70 = scalar_select %p67, %s68, %s69
      %p73 = pneg %p67
      %p74 = scmp.eq.s32.totalorder %s16, 1
      %p75 = por %p73, %p74
      %p76 = scmp.ne.s32.totalorder %s68, %s71
      %p77 = scmp.eq.s32.totalorder %s16, 0
      %p78 = por %p76, %p77
      %p79 = scmp.ne.s32.totalorder %s68, %s71
      %p80 = scmp.eq.s32.totalorder %s21, 1
      %p81 = por %p79, %p80
      %p82 = scmp.ne.s32.totalorder %s71, %s72
      %p83 = scmp.eq.s32.totalorder %s21, 0
      %p84 = por %p82, %p83
      %p85 = scmp.ne.s32.totalorder %s71, %s72
      %p86 = scmp.eq.s32.totalorder %s22, 1
      %p87 = por %p85, %p86
      %p89 = scmp.ne.s32.totalorder %s72, %s88
      %p90 = scmp.eq.s32.totalorder %s22, 0
      %p91 = por %p89, %p90
      %s92 = ssub.s32 %s24, %s31
      %p93 = scmp.eq.s32.totalorder %s92, 0
      %s95 = sadd.s32 %s94, 1
      %s96 = scalar_select %p93, %s94, %s95
      %p99 = pneg %p93
      %p100 = scmp.eq.s32.totalorder %s16, 1
      %p101 = por %p99, %p100
      %p102 = scmp.ne.s32.totalorder %s94, %s97
      %p103 = scmp.eq.s32.totalorder %s16, 0
      %p104 = por %p102, %p103
      %p105 = scmp.ne.s32.totalorder %s94, %s97
      %p106 = scmp.eq.s32.totalorder %s21, 1
      %p107 = por %p105, %p106
      %p108 = scmp.ne.s32.totalorder %s97, %s98
      %p109 = scmp.eq.s32.totalorder %s21, 0
      %p110 = por %p108, %p109
      %p111 = scmp.ne.s32.totalorder %s97, %s98
      %p112 = scmp.eq.s32.totalorder %s22, 1
      %p113 = por %p111, %p112
      %p115 = scmp.ne.s32.totalorder %s98, %s114
      %p116 = scmp.eq.s32.totalorder %s22, 0
      %p117 = por %p115, %p116
      %s119 = sadd.s32 %s118, 1
      %p122 = scmp.eq.s32.totalorder %s16, 1
      %p123 = scmp.ne.s32.totalorder %s118, %s120
      %p124 = scmp.eq.s32.totalorder %s16, 0
      %p125 = por %p123, %p124
      %p126 = scmp.ne.s32.totalorder %s118, %s120
      %p127 = scmp.eq.s32.totalorder %s21, 1
      %p128 = por %p126, %p127
      %p129 = scmp.ne.s32.totalorder %s120, %s121
      %p130 = scmp.eq.s32.totalorder %s21, 0
      %p131 = por %p129, %p130
      %p132 = scmp.ne.s32.totalorder %s120, %s121
      %p133 = scmp.eq.s32.totalorder %s22, 1
      %p134 = por %p132, %p133
      %p136 = scmp.ne.s32.totalorder %s121, %s135
      %p137 = scmp.eq.s32.totalorder %s22, 0
      %p138 = por %p136, %p137
      %s140 = sadd.s32 %s139, 1
      %p143 = scmp.eq.s32.totalorder %s16, 1
      %p144 = scmp.ne.s32.totalorder %s139, %s141
      %p145 = scmp.eq.s32.totalorder %s16, 0
      %p146 = por %p144, %p145
      %p147 = scmp.ne.s32.totalorder %s139, %s141
      %p148 = scmp.eq.s32.totalorder %s21, 1
      %p149 = por %p147, %p148
      %p150 = scmp.ne.s32.totalorder %s141, %s142
      %p151 = scmp.eq.s32.totalorder %s21, 0
      %p152 = por %p150, %p151
      %p153 = scmp.ne.s32.totalorder %s141, %s142
      %p154 = scmp.eq.s32.totalorder %s22, 1
      %p155 = por %p153, %p154
      %p157 = scmp.ne.s32.totalorder %s142, %s156
      %p158 = scmp.eq.s32.totalorder %s22, 0
      %p159 = por %p157, %p158
      %s161 = sadd.s32 %s160, 1
      %p164 = scmp.eq.s32.totalorder %s16, 1
      %p165 = scmp.ne.s32.totalorder %s160, %s162
      %p166 = scmp.eq.s32.totalorder %s16, 0
      %p167 = por %p165, %p166
      %p168 = scmp.ne.s32.totalorder %s160, %s162
      %p169 = scmp.eq.s32.totalorder %s21, 1
      %p170 = por %p168, %p169
      %p171 = scmp.ne.s32.totalorder %s162, %s163
      %p172 = scmp.eq.s32.totalorder %s21, 0
      %p173 = por %p171, %p172
      %p174 = scmp.ne.s32.totalorder %s162, %s163
      %p175 = scmp.eq.s32.totalorder %s22, 1
      %p176 = por %p174, %p175
      %p178 = scmp.ne.s32.totalorder %s163, %s177
      %p179 = scmp.eq.s32.totalorder %s22, 0
      %p180 = por %p178, %p179
      %s181 = ssub.s32 %s23, %s35
      %s182 = ssub.s32 %s24, %s31
      %s183 = sor.u32 %s181, %s182
      %p184 = scmp.eq.s32.totalorder %s183, 0
      %s186 = sadd.s32 %s185, 1
      %s187 = scalar_select %p184, %s185, %s186
      %p190 = pneg %p184
      %p191 = scmp.eq.s32.totalorder %s16, 1
      %p192 = por %p190, %p191
      %p193 = scmp.ne.s32.totalorder %s185, %s188
      %p194 = scmp.eq.s32.totalorder %s16, 0
      %p195 = por %p193, %p194
      %p196 = scmp.ne.s32.totalorder %s185, %s188
      %p197 = scmp.eq.s32.totalorder %s21, 1
      %p198 = por %p196, %p197
      %p199 = scmp.ne.s32.totalorder %s188, %s189
      %p200 = scmp.eq.s32.totalorder %s21, 0
      %p201 = por %p199, %p200
      %p202 = scmp.ne.s32.totalorder %s188, %s189
      %p203 = scmp.eq.s32.totalorder %s22, 1
      %p204 = por %p202, %p203
      %p206 = scmp.ne.s32.totalorder %s189, %s205
      %p207 = scmp.eq.s32.totalorder %s22, 0
      %p208 = por %p206, %p207
      %p209 = scmp.le.s32.totalorder 1, %s16
      %p210 = scmp.lt.s32.totalorder %s16, 3
      %p211 = pnand %p209, %p210
      %p212 = pneg %p211
      // Predicated region
      $region9: #{tpu_custom_call.1} parent=5 // pred_check
        _
      $region10: #{tpu_custom_call.1} parent=5 // pred_check_branch
        %214 = sbr.rel (%p211) target = $region12
      $region11: #{tpu_custom_call.1} parent=5 // pred_region
        %s215 = ssub.s32 %s16, 1
        // Predicated region
        $region13: #{tpu_custom_call.1} parent=11 // pred_check
          %p216 = pneg %p110
        $region14: #{tpu_custom_call.1} parent=11 // pred_check_branch
          %218 = sbr.rel (%p216) target = $region16
        $region15: #{tpu_custom_call.1} parent=11 // pred_region
          %s220 = ssub.s32 128, 128
          %221 = vsyncadd [#allocation3], %s220
          %s222 = smul.addr %s26, 128
          %s223 = scalar_lea.hbm %s2, %s222
          %s225 = sshll.u32 [#allocation2], 4
          %s226 = int_to_ptr.vmem [resolvable:$true] %s225
          %228 = dma.hbm_to_vmem [thread:$0]  %s223, 128, %s226, [#allocation3]
        $region16: #{tpu_custom_call.1} parent=11 // pred_fallthru
          _
        // Predicated region
        $region17: #{tpu_custom_call.1} parent=11 // pred_check
          %p229 = pneg %p131
        $region18: #{tpu_custom_call.1} parent=11 // pred_check_branch
          %231 = sbr.rel (%p229) target = $region20
        $region19: #{tpu_custom_call.1} parent=11 // pred_region
          _
        $region20: #{tpu_custom_call.1} parent=11 // pred_fallthru
          _
        // Predicated region
        $region21: #{tpu_custom_call.1} parent=11 // pred_check
          %p232 = pneg %p152
        $region22: #{tpu_custom_call.1} parent=11 // pred_check_branch
          %234 = sbr.rel (%p232) target = $region24
        $region23: #{tpu_custom_call.1} parent=11 // pred_region
          _
        $region24: #{tpu_custom_call.1} parent=11 // pred_fallthru
          _
        // Predicated region
        $region25: #{tpu_custom_call.1} parent=11 // pred_check
          %p235 = pneg %p173
        $region26: #{tpu_custom_call.1} parent=11 // pred_check_branch
          %237 = sbr.rel (%p235) target = $region28
        $region27: #{tpu_custom_call.1} parent=11 // pred_region
          _
        $region28: #{tpu_custom_call.1} parent=11 // pred_fallthru
          _
      $region12: #{tpu_custom_call.1} parent=5 // pred_fallthru
        _
      %p238 = scmp.lt.s32.totalorder %s16, 2
      // Predicated region
      $region29: #{tpu_custom_call.1} parent=5 // pred_check
        %p239 = pneg %p238
      $region30: #{tpu_custom_call.1} parent=5 // pred_check_branch
        %241 = sbr.rel (%p239) target = $region32
      $region31: #{tpu_custom_call.1} parent=5 // pred_region
        // Predicated region
        $region33: #{tpu_custom_call.1} parent=31 // pred_check
          %p242 = pneg %p50
        $region34: #{tpu_custom_call.1} parent=31 // pred_check_branch
          %244 = sbr.rel (%p242) target = $region36
        $region35: #{tpu_custom_call.1} parent=31 // pred_region
          %p245 = scmp.lt.s32.totalorder %s23, 1
          %s246 = scalar_select %p245, %s23, 1
          %p247 = scmp.lt.s32.totalorder %s24, 0
          %s248 = scalar_select %p247, %s24, 0
          %s249 = sadd.s32 %s248, %s246
          %s250 = smul.addr %s249, 8
          %s251 = scalar_lea.vmem %s0, %s250
        $region36: #{tpu_custom_call.1} parent=31 // pred_fallthru
          _
        // Predicated region
        $region37: #{tpu_custom_call.1} parent=31 // pred_check
          %p252 = pneg %p78
        $region38: #{tpu_custom_call.1} parent=31 // pred_check_branch
          %254 = sbr.rel (%p252) target = $region40
        $region39: #{tpu_custom_call.1} parent=31 // pred_region
          %p255 = scmp.lt.s32.totalorder %s23, 1
          %s256 = scalar_select %p255, %s23, 1
          %p257 = scmp.lt.s32.totalorder %s24, 0
          %s258 = scalar_select %p257, %s24, 0
          %s259 = sadd.s32 %s258, %s256
          %s260 = smul.addr %s259, 8
          %s261 = scalar_lea.vmem %s1, %s260
        $region40: #{tpu_custom_call.1} parent=31 // pred_fallthru
          _
      $region32: #{tpu_custom_call.1} parent=5 // pred_fallthru
        _
      %p262 = scmp.le.s32.totalorder 1, %s16
      %p263 = scmp.lt.s32.totalorder %s16, 3
      %p264 = pnand %p262, %p263
      %p265 = pneg %p264
      // Predicated region
      $region41: #{tpu_custom_call.1} parent=5 // pred_check
        _
      $region42: #{tpu_custom_call.1} parent=5 // pred_check_branch
        %267 = sbr.rel (%p264) target = $region44
      $region43: #{tpu_custom_call.1} parent=5 // pred_region
        %s268 = ssub.s32 %s16, 1
        // Predicated region
        $region45: #{tpu_custom_call.1} parent=43 // pred_check
          %p269 = pneg %p110
        $region46: #{tpu_custom_call.1} parent=43 // pred_check_branch
          %271 = sbr.rel (%p269) target = $region48
        $region47: #{tpu_custom_call.1} parent=43 // pred_region
          %272 = dma.done [#allocation3], 128
        $region48: #{tpu_custom_call.1} parent=43 // pred_fallthru
          _
        %p273 = scmp.lt.s32.totalorder %s25, 1
        %s274 = scalar_select %p273, %s25, 1
        %p275 = scmp.lt.s32.totalorder %s26, 0
        %s276 = scalar_select %p275, %s26, 0
        %s277 = sadd.s32 %s276, %s274
        %s278 = smul.addr %s277, 8
        %s279 = scalar_lea.vmem %s0, %s278
        %p280 = pneg %p56
        %p281 = pneg %p53
        %p282 = scmp.lt.s32.totalorder %s25, 1
        %s283 = scalar_select %p282, %s25, 1
        %p284 = scmp.lt.s32.totalorder %s26, 0
        %s285 = scalar_select %p284, %s26, 0
        %s286 = sadd.s32 %s285, %s283
        %s287 = smul.addr %s286, 8
        %s288 = scalar_lea.vmem %s1, %s287
        %p289 = pneg %p84
        %p290 = pneg %p81
        %p291 = pneg %p110
        %p292 = pneg %p107
        %p293 = pneg %p131
        %p294 = pneg %p128
        %p295 = pneg %p152
        %p296 = pneg %p149
        %p297 = pneg %p173
        %p298 = pneg %p170
        %p299 = pneg %p201
        %p300 = pneg %p198
        %s301 = sand.u32 %s188, 1
        %s302 = scalar_lea.sflag [#allocation4], %s301
        %s303 = sand.u32 %s188, 1
        %s304 = smul.addr %s303, 8
        %s305 = scalar_lea.vmem [#allocation5], %s304
        %p306 = scmp.lt.s32.totalorder %s25, 1
        %s307 = scalar_select %p306, %s25, 1
        %p308 = scmp.lt.s32.totalorder %s26, 0
        %s309 = scalar_select %p308, %s26, 0
        %s310 = sadd.s32 %s309, %s307
        %s311 = smul.addr %s310, 8
        %s312 = scalar_lea.vmem %s0, %s311
        %p313 = scmp.lt.s32.totalorder %s25, 1
        %s314 = scalar_select %p313, %s25, 1
        %p315 = scmp.lt.s32.totalorder %s26, 0
        %s316 = scalar_select %p315, %s26, 0
        %s317 = sadd.s32 %s316, %s314
        %s318 = smul.addr %s317, 8
        %s319 = scalar_lea.vmem %s1, %s318
        %v321 = vld [vmem:[%s319] sm:$0xff]
        %v322 = vlaneseq
        %v323 = vand.u32 %v322, 127
        %v324 = vld [vmem:[%s312] sm:$0xff]
        %325 = vset.pattern.permute.xlu0 0
        %326 = vperm.xlu0 %325, %v324
        %v327 = vpop.permute.xlu0 %326
        %vm328 = vcmp.eq.s32.totalorder %v323, %v327
        %v329 = vsel %vm328, 1, 0
        %v330 = vcvt.s32.f32 %v329
        %v331 = vpack.c.bf16 %v330, %v330
        %v332 = vld [vmem:[#allocation2] sm:$0xff]
        %v333 = vadd.f32 %v321, %v332
        %v334 = vld [vmem:[%s3] sm:$0xf]
        %v335 = vld [vmem:[%s3 + $0x4] sm:$0xf]
        %v338 = vunpack.c.l.b16 %v334
        %v339 = vunpack.c.l.b16 %v335
        %v340 = vpack.c.b16 %v339, %v338
        %vm342 = vcmask 130048
        %v344 = vsel %vm342, %v331, 0
        %346 = vmatprep.subr.bf16.mxu0 0
        %347 = vmatpush1.bf16.msra.mxu0 %v340
        %348 = vmatprep.subr.bf16.mxu0 0
        %349 = vmatpush1.bf16.msra.mxu0 0
        %350 = vmatprep.subr.bf16.mxu0 0
        %351 = vmatpush1.bf16.msra.mxu0 0
        %352 = vmatprep.subr.bf16.mxu0 0
        %353 = vmatpush1.bf16.msra.mxu0 0
        %354 = vmatprep.subr.bf16.mxu0 0
        %355 = vmatpush1.bf16.msra.mxu0 0
        %356 = vmatprep.subr.bf16.mxu0 0
        %357 = vmatpush1.bf16.msra.mxu0 0
        %358 = vmatprep.subr.bf16.mxu0 0
        %359 = vmatpush1.bf16.msra.mxu0 0
        %360 = vmatprep.subr.bf16.mxu0 0
        %361 = vmatpush1.bf16.msra.mxu0 0
        %362 = vmatprep.subr.bf16.mxu0 0
        %363 = vmatpush1.bf16.msra.mxu0 0
        %364 = vmatprep.subr.bf16.mxu0 0
        %365 = vmatpush1.bf16.msra.mxu0 0
        %366 = vmatprep.subr.bf16.mxu0 0
        %367 = vmatpush1.bf16.msra.mxu0 0
        %368 = vmatprep.subr.bf16.mxu0 0
        %369 = vmatpush1.bf16.msra.mxu0 0
        %370 = vmatprep.subr.bf16.mxu0 0
        %371 = vmatpush1.bf16.msra.mxu0 0
        %372 = vmatprep.subr.bf16.mxu0 0
        %373 = vmatpush1.bf16.msra.mxu0 0
        %374 = vmatprep.subr.bf16.mxu0 0
        %375 = vmatpush1.bf16.msra.mxu0 0
        %376 = vmatprep.subr.bf16.mxu0 0
        %377 = vmatpush1.bf16.msra.mxu0 0
        %378 = vmatprep.mubr.bf16.mxu0 0
        %379 = vmatmul.mubr.bf16.gmra.mrb[0].mxu0 %v344
        %v380 = vpop.f32.mrb[0].mxu0
        %v381 = vadd.f32 0.0, %v380
        %v382 = vpop.f32.mrb[0].mxu0
        %v383 = vpop.f32.mrb[0].mxu0
        %v384 = vpop.f32.mrb[0].mxu0
        %385 = vdwg.mxu0
        %v386 = vadd.f32 %v333, %v381
        %vm387 = vcmask 261120
        %v388 = vsel %vm387, %v386, 0.0
        %389 = vadd.xlane.f32.xlu0 %v388
        %v390 = vpop.xlane.xlu0 %389
        %v391 = vrcp.pop 32.0
        %v392 = vmul.f32 %v390, %v391
        %v393 = vsub.f32 %v386, %v392
        %v394 = vmul.f32 %v393, %v393
        %v395 = vsel %vm387, %v394, 0.0
        %396 = vadd.xlane.f32.xlu0 %v395
        %v397 = vpop.xlane.xlu0 %396
        %v398 = vmul.f32 %v397, %v391
        %v399 = vadd.f32 %v398, 1e-12
        %v400 = vrsqrt.pop %v399
        %v401 = vmul.f32 %v393, %v400
        %v402 = vld [vmem:[%s4] sm:$0x1]
        %v404 = vlaneseq
        %v405 = vshrl.u32 %v404, 7
        %v406 = vsub.s32 0, %v405
        %v407 = vrot.slane %v402, %v406
        %v409 = vmul.f32 %v401, %v407
        %v410 = vld [vmem:[%s5] sm:$0x1]
        %v412 = vlaneseq
        %v413 = vshrl.u32 %v412, 7
        %v414 = vsub.s32 0, %v413
        %v415 = vrot.slane %v410, %v414
        %v417 = vadd.f32 %v409, %v415
        %418 = vst.msk [vmem:[%s305] sm:$0xff] %vm387, %v417
        %s419 = sand.u32 %s188, 1
        %s420 = scalar_lea.sflag [#allocation4], %s419
        %s421 = sand.u32 %s188, 1
        %s422 = smul.addr %s421, 8
        %s423 = scalar_lea.vmem [#allocation5], %s422
        // Predicated region
        $region49: #{tpu_custom_call.1} parent=43 // pred_check
          %p424 = pneg %p198
        $region50: #{tpu_custom_call.1} parent=43 // pred_check_branch
          %426 = sbr.rel (%p424) target = $region52
        $region51: #{tpu_custom_call.1} parent=43 // pred_region
          %s428 = ssub.s32 128, 128
          %429 = vsyncadd %s420, %s428
          %s430 = sadd.s32 %s26, %s25
          %s431 = smul.addr %s430, 128
          %s432 = scalar_lea.hbm %s6, %s431
          %s434 = sshll.u32 %s423, 4
          %s435 = int_to_ptr.vmem [resolvable:$true] %s434
          %437 = dma.vmem_to_hbm [thread:$0]  %s435, 128, %s432, %s420
        $region52: #{tpu_custom_call.1} parent=43 // pred_fallthru
          _
      $region44: #{tpu_custom_call.1} parent=5 // pred_fallthru
        _
      %p438 = scmp.le.s32.totalorder 2, %s16
      // Predicated region
      $region53: #{tpu_custom_call.1} parent=5 // pred_check
        %p439 = pneg %p438
      $region54: #{tpu_custom_call.1} parent=5 // pred_check_branch
        %441 = sbr.rel (%p439) target = $region56
      $region55: #{tpu_custom_call.1} parent=5 // pred_region
        %s442 = ssub.s32 %s16, 2
        // Predicated region
        $region57: #{tpu_custom_call.1} parent=55 // pred_check
          %p443 = pneg %p204
        $region58: #{tpu_custom_call.1} parent=55 // pred_check_branch
          %445 = sbr.rel (%p443) target = $region60
        $region59: #{tpu_custom_call.1} parent=55 // pred_region
          %s446 = sand.u32 %s189, 1
          %s447 = scalar_lea.sflag [#allocation4], %s446
          %s448 = sand.u32 %s189, 1
          %s449 = smul.addr %s448, 8
          %s450 = scalar_lea.vmem [#allocation5], %s449
          %451 = dma.done %s447, 128
        $region60: #{tpu_custom_call.1} parent=55 // pred_fallthru
          _
      $region56: #{tpu_custom_call.1} parent=5 // pred_fallthru
        _
    $region6: #{tpu_custom_call.1} parent=1 // loop_footer
      %s20 = sadd.s32 1, %s16
    $region7: #{tpu_custom_call.1} parent=1 // loop_footer_branch
      %15 = sbr.rel target = $region3
    $region8: #{tpu_custom_call.1} parent=1 // loop_exit
      _
    %452 = vsyncpa [#allocation3], 1
    %s453 = scalar_lea.sflag [#allocation3], 1
    %454 = vsyncpa %s453, 1
    %455 = vsyncpa [#allocation4], 1
    %s456 = scalar_lea.sflag [#allocation4], 1
    %457 = vsyncpa %s456, 1

</llo_original>
